<compile_context>
chip_gen: v5e
topology: v5e:2x2
jax: 0.10.0
libtpu: 0.0.40
codegen_flags: <defaults>
</compile_context>

<pallas_src>
import jax
import jax.numpy as jnp
import numpy as np
from jax import lax
from jax.experimental import pallas as pl
from jax.experimental.pallas import tpu as pltpu  # noqa: F401  (TPU backend assumed)

# ---------------- config (small, TPU-friendly) ----------------
B = 2              # batch
S = 8              # sequence length
BS = B * S         # flattened rows
H = 128            # hidden size == num_cls_vector
F = 256            # FFN intermediate
VOCAB = 64
NUM_LABELS = 8
NUM_CLS_VECTOR = H
OUT_PAD = 128      # lane-dense classifier output width (>= NUM_LABELS)
LN_EPS = 1e-5


# ---------------- fused embed + encoder + classifier kernel -----------------
def fused_kernel(ids_ref, mask_ref, blockbias_ref, pos_ref,
                 tok_emb_ref, wqkv_ref, wo_ref,
                 ln1_g_ref, ln1_b_ref,
                 w1_ref, b1_ref, w2_ref, b2_ref,
                 ln2_g_ref, ln2_b_ref,
                 clsw_ref, clsb_ref,
                 out_ref):
    # --- embedding: one-hot gather on the MXU + positional add --------------
    ids = ids_ref[...]                                          # (BS, 1) int32
    eq = lax.broadcasted_iota(jnp.int32, (BS, VOCAB), 1) == ids  # (BS, VOCAB)
    onehot = jnp.where(eq, 1.0, 0.0).astype(jnp.bfloat16)
    x = jnp.dot(onehot, tok_emb_ref[...],
                preferred_element_type=jnp.float32) + pos_ref[...]   # (BS,H) f32

    # --- fused QKV projection (1/sqrt(H) pre-folded into Q columns) ---------
    qkv = jnp.dot(x.astype(jnp.bfloat16), wqkv_ref[...],
                  preferred_element_type=jnp.float32)           # (BS, 3H) f32
    q = qkv[:, :H]
    k = qkv[:, H:2 * H]
    v = qkv[:, 2 * H:]

    # --- attention scores: contract H axis of q and k (no k transpose) ------
    scores = lax.dot_general(
        q.astype(jnp.bfloat16), k.astype(jnp.bfloat16),
        dimension_numbers=(((1,), (1,)), ((), ())),
        preferred_element_type=jnp.float32)                     # (BS, BS)

    # additive bias: 0 on valid (same-sequence, unpadded key) entries, -1e9 else
    bias = blockbias_ref[...] + (mask_ref[...] - 1.0) * 1e9     # (BS,BS)+(1,BS)
    scores = scores + bias

    # softmax in f32; post-exp zeroing guards the fully-masked-sequence case
    scores = scores - scores.max(axis=-1, keepdims=True)
    p = jnp.exp(scores)
    p = jnp.where(bias >= 0.0, p, 0.0)
    denom = jnp.maximum(p.sum(axis=-1, keepdims=True), 1e-30)
    p = p * pl.reciprocal(denom)                                # exact reciprocal

    attn = jnp.dot(p.astype(jnp.bfloat16), v.astype(jnp.bfloat16),
                   preferred_element_type=jnp.float32)          # (BS, H)
    attn = jnp.dot(attn.astype(jnp.bfloat16), wo_ref[...],
                   preferred_element_type=jnp.float32)          # (BS, H)

    # --- residual + layernorm 1 (f32 elementwise) ----------------------------
    h = x + attn
    mu = jnp.mean(h, axis=-1, keepdims=True)
    var = jnp.mean((h - mu) ** 2, axis=-1, keepdims=True)
    h = (h - mu) * lax.rsqrt(var + LN_EPS) * ln1_g_ref[...] + ln1_b_ref[...]

    # --- FFN (bf16 MXU inputs, f32 accumulation / activation) ----------------
    ff = jnp.dot(h.astype(jnp.bfloat16), w1_ref[...],
                 preferred_element_type=jnp.float32) + b1_ref[...]
    # TODO(synk): PyTorch nn.GELU defaults to exact erf; tanh approx used here.
    ff = jax.nn.gelu(ff, approximate=True)
    ff = jnp.dot(ff.astype(jnp.bfloat16), w2_ref[...],
                 preferred_element_type=jnp.float32) + b2_ref[...]

    # --- residual + layernorm 2 (f32 elementwise) -----------------------------
    h2 = h + ff
    mu2 = jnp.mean(h2, axis=-1, keepdims=True)
    var2 = jnp.mean((h2 - mu2) ** 2, axis=-1, keepdims=True)
    h2 = (h2 - mu2) * lax.rsqrt(var2 + LN_EPS) * ln2_g_ref[...] + ln2_b_ref[...]

    # --- classifier epilogue: all rows, lane-dense (BS, 128) output ----------
    out_ref[...] = jnp.dot(h2.astype(jnp.bfloat16), clsw_ref[...],
                           preferred_element_type=jnp.float32) + clsb_ref[...]


def run_model(ids_col, mask_row, params):
    def full(a):
        return pl.BlockSpec(a.shape, lambda: (0,) * a.ndim)

    operands = (ids_col, mask_row,
                params["block_bias"], params["pos_flat"],
                params["tok_emb"], params["wqkv"], params["wo"],
                params["ln1_g"], params["ln1_b"],
                params["w1"], params["b1"], params["w2"], params["b2"],
                params["ln2_g"], params["ln2_b"],
                params["cls_w_pad"], params["cls_b_pad"])
    return pl.pallas_call(
        fused_kernel,
        out_shape=jax.ShapeDtypeStruct((BS, OUT_PAD), jnp.float32),
        in_specs=[full(op) for op in operands],
        out_specs=pl.BlockSpec((BS, OUT_PAD), lambda: (0, 0)),
    )(*operands)


# ---------------- full forward (mirrors CustomTransformerModel.forward) -----
@jax.jit
def forward(input_ids, attention_mask, params):
    ids_col = input_ids.reshape(BS, 1).astype(jnp.int32)
    mask_row = attention_mask.astype(jnp.float32).reshape(1, BS)
    out = run_model(ids_col, mask_row, params)                 # (BS, 128)
    # self.dropout(outputs[0]) is identity in eval mode.
    # TODO(synk): training-mode dropout (p=0.1) not implemented; eval identity.
    # CLS row of each sequence (rows 0, S, ...) and the real label lanes.
    return out[::S, :NUM_LABELS]                               # (B, NUM_LABELS)


def init_params(key):
    ks = jax.random.split(key, 9)
    n = lambda k, shape, scale: (scale * jax.random.normal(k, shape)).astype(jnp.float32)

    tok_emb = n(ks[0], (VOCAB, H), 0.02)
    pos_emb = n(ks[1], (S, H), 0.02)
    wq = n(ks[2], (H, H), 0.05)
    wk = n(ks[3], (H, H), 0.05)
    wv = n(ks[4], (H, H), 0.05)
    wo = n(ks[5], (H, H), 0.05)
    w1 = n(ks[6], (H, F), 0.05)
    w2 = n(ks[7], (F, H), 0.05)
    # nn.Linear(num_cls_vector, num_labels): weight (out, in), bias (out,)
    cls_w = n(ks[8], (NUM_LABELS, NUM_CLS_VECTOR), 0.05)
    cls_b = jnp.zeros((NUM_LABELS,), jnp.float32)

    # fold 1/sqrt(H) into the Q columns of the fused QKV weight (init-time, free)
    scale = 1.0 / (H ** 0.5)
    wqkv = jnp.concatenate([wq * scale, wk, wv], axis=1).astype(jnp.bfloat16)

    # static block-diagonal additive bias (0 within a sequence, -1e9 across)
    rows = np.arange(BS) // S
    block_bias = np.where(rows[:, None] == rows[None, :], 0.0, -1e9).astype(np.float32)

    # lane-dense classifier: zero-pad W^T to (H, 128), bias to (1, 128)
    cls_w_pad = jnp.zeros((H, OUT_PAD), jnp.float32).at[:, :NUM_LABELS].set(cls_w.T)
    cls_b_pad = jnp.zeros((1, OUT_PAD), jnp.float32).at[0, :NUM_LABELS].set(cls_b)

    return {
        "tok_emb": tok_emb.astype(jnp.bfloat16),        # (VOCAB, H) bf16
        "pos_flat": jnp.tile(pos_emb, (B, 1)),          # (BS, H) f32, pre-tiled
        "block_bias": jnp.asarray(block_bias),          # (BS, BS) f32
        "wqkv": wqkv,                                   # (H, 3H) bf16, scale folded
        "wo": wo.astype(jnp.bfloat16),
        "ln1_g": jnp.ones((1, H), jnp.float32),
        "ln1_b": jnp.zeros((1, H), jnp.float32),
        "w1": w1.astype(jnp.bfloat16),
        "b1": jnp.zeros((1, F), jnp.float32),
        "w2": w2.astype(jnp.bfloat16),
        "b2": jnp.zeros((1, H), jnp.float32),
        "ln2_g": jnp.ones((1, H), jnp.float32),
        "ln2_b": jnp.zeros((1, H), jnp.float32),
        "cls_w_pad": cls_w_pad.astype(jnp.bfloat16),    # (H, 128) bf16, zero-padded
        "cls_b_pad": cls_b_pad,                         # (1, 128) f32, zero-padded
    }


if __name__ == "__main__":
    key = jax.random.PRNGKey(0)
    pkey, ikey = jax.random.split(key)
    params = init_params(pkey)

    input_ids = jax.random.randint(ikey, (B, S), 0, VOCAB, dtype=jnp.int32)
    attention_mask = jnp.ones((B, S), dtype=jnp.int32)

    logits = forward(input_ids, attention_mask, params)
    jax.block_until_ready(logits)
    assert logits.shape == (B, NUM_LABELS) and logits.dtype == jnp.float32
    print("KERNEL_OK")
</pallas_src>

<mosaic_0001>
module attributes {stable_mosaic.version = 11 : i64} {
  func.func @fused_kernel(%arg0: memref<16x1xi32, #tpu.memory_space<vmem>>, %arg1: memref<1x16xf32, #tpu.memory_space<vmem>>, %arg2: memref<16x16xf32, #tpu.memory_space<vmem>>, %arg3: memref<16x128xf32, #tpu.memory_space<vmem>>, %arg4: memref<64x128xbf16, #tpu.memory_space<vmem>>, %arg5: memref<128x384xbf16, #tpu.memory_space<vmem>>, %arg6: memref<128x128xbf16, #tpu.memory_space<vmem>>, %arg7: memref<1x128xf32, #tpu.memory_space<vmem>>, %arg8: memref<1x128xf32, #tpu.memory_space<vmem>>, %arg9: memref<128x256xbf16, #tpu.memory_space<vmem>>, %arg10: memref<1x256xf32, #tpu.memory_space<vmem>>, %arg11: memref<256x128xbf16, #tpu.memory_space<vmem>>, %arg12: memref<1x128xf32, #tpu.memory_space<vmem>>, %arg13: memref<1x128xf32, #tpu.memory_space<vmem>>, %arg14: memref<1x128xf32, #tpu.memory_space<vmem>>, %arg15: memref<128x128xbf16, #tpu.memory_space<vmem>>, %arg16: memref<1x128xf32, #tpu.memory_space<vmem>>, %arg17: memref<16x128xf32, #tpu.memory_space<vmem>>) attributes {dimension_semantics = [], scalar_prefetch = 0 : i64, scratch_operands = 0 : i64, tpu.core_type = #tpu.core_type<tc>} {
    %c0 = arith.constant 0 : index
    %c0_0 = arith.constant 0 : index
    %0 = vector.load %arg0[%c0, %c0_0] : memref<16x1xi32, #tpu.memory_space<vmem>>, vector<16x1xi32>
    %1 = tpu.iota {dimensions = array<i32: 1>} : vector<16x64xi32>
    %2 = vector.broadcast %0 : vector<16x1xi32> to vector<16x64xi32>
    %3 = arith.cmpi eq, %1, %2 : vector<16x64xi32>
    %cst = arith.constant 1.000000e+00 : f32
    %cst_1 = arith.constant 0.000000e+00 : f32
    %4 = vector.broadcast %cst : f32 to vector<16x64xf32>
    %5 = vector.broadcast %cst_1 : f32 to vector<16x64xf32>
    %6 = arith.select %3, %4, %5 : vector<16x64xi1>, vector<16x64xf32>
    %7 = arith.truncf %6 : vector<16x64xf32> to vector<16x64xbf16>
    %c0_2 = arith.constant 0 : index
    %c0_3 = arith.constant 0 : index
    %8 = vector.load %arg4[%c0_2, %c0_3] : memref<64x128xbf16, #tpu.memory_space<vmem>>, vector<64x128xbf16>
    %cst_4 = arith.constant dense<0.000000e+00> : vector<16x128xf32>
    %9 = tpu.matmul %7, %8, %cst_4 {dimension_numbers = #tpu.dot_dimension_numbers<[1], [0], [0], [1], [0, 0, 1, 1], [], []>} : vector<16x64xbf16>, vector<64x128xbf16>, vector<16x128xf32> -> vector<16x128xf32>
    %c0_5 = arith.constant 0 : index
    %c0_6 = arith.constant 0 : index
    %10 = vector.load %arg3[%c0_5, %c0_6] : memref<16x128xf32, #tpu.memory_space<vmem>>, vector<16x128xf32>
    %11 = arith.addf %9, %10 : vector<16x128xf32>
    %12 = arith.truncf %11 : vector<16x128xf32> to vector<16x128xbf16>
    %c0_7 = arith.constant 0 : index
    %c0_8 = arith.constant 0 : index
    %13 = vector.load %arg5[%c0_7, %c0_8] : memref<128x384xbf16, #tpu.memory_space<vmem>>, vector<128x384xbf16>
    %cst_9 = arith.constant dense<0.000000e+00> : vector<16x384xf32>
    %14 = tpu.matmul %12, %13, %cst_9 {dimension_numbers = #tpu.dot_dimension_numbers<[1], [0], [0], [1], [0, 0, 1, 1], [], []>} : vector<16x128xbf16>, vector<128x384xbf16>, vector<16x384xf32> -> vector<16x384xf32>
    %15 = vector.extract_strided_slice %14 {offsets = [0, 0], sizes = [16, 128], strides = [1, 1]} : vector<16x384xf32> to vector<16x128xf32>
    %16 = vector.extract_strided_slice %14 {offsets = [0, 128], sizes = [16, 128], strides = [1, 1]} : vector<16x384xf32> to vector<16x128xf32>
    %17 = vector.extract_strided_slice %14 {offsets = [0, 256], sizes = [16, 128], strides = [1, 1]} : vector<16x384xf32> to vector<16x128xf32>
    %18 = arith.truncf %15 : vector<16x128xf32> to vector<16x128xbf16>
    %19 = arith.truncf %16 : vector<16x128xf32> to vector<16x128xbf16>
    %cst_10 = arith.constant dense<0.000000e+00> : vector<16x16xf32>
    %20 = tpu.matmul %18, %19, %cst_10 {dimension_numbers = #tpu.dot_dimension_numbers<[1], [1], [0], [0], [0, 0, 1, 0], [], []>} : vector<16x128xbf16>, vector<16x128xbf16>, vector<16x16xf32> -> vector<16x16xf32>
    %c0_11 = arith.constant 0 : index
    %c0_12 = arith.constant 0 : index
    %21 = vector.load %arg2[%c0_11, %c0_12] : memref<16x16xf32, #tpu.memory_space<vmem>>, vector<16x16xf32>
    %c0_13 = arith.constant 0 : index
    %c0_14 = arith.constant 0 : index
    %22 = vector.load %arg1[%c0_13, %c0_14] : memref<1x16xf32, #tpu.memory_space<vmem>>, vector<1x16xf32>
    %cst_15 = arith.constant 1.000000e+00 : f32
    %23 = vector.broadcast %cst_15 : f32 to vector<1x16xf32>
    %24 = arith.subf %22, %23 : vector<1x16xf32>
    %cst_16 = arith.constant 1.000000e+09 : f32
    %25 = vector.broadcast %cst_16 : f32 to vector<1x16xf32>
    %26 = arith.mulf %24, %25 : vector<1x16xf32>
    %27 = vector.broadcast %26 : vector<1x16xf32> to vector<16x16xf32>
    %28 = arith.addf %21, %27 : vector<16x16xf32>
    %29 = arith.addf %20, %28 : vector<16x16xf32>
    %cst_17 = arith.constant dense<0xFF800000> : vector<16xf32>
    %30 = vector.multi_reduction <maximumf>, %29, %cst_17 [1] : vector<16x16xf32> to vector<16xf32>
    %31 = vector.shape_cast %30 : vector<16xf32> to vector<16x1xf32>
    %32 = vector.broadcast %31 : vector<16x1xf32> to vector<16x16xf32>
    %33 = arith.subf %29, %32 : vector<16x16xf32>
    %34 = math.exp %33 : vector<16x16xf32>
    %cst_18 = arith.constant 0.000000e+00 : f32
    %35 = vector.broadcast %cst_18 : f32 to vector<16x16xf32>
    %36 = arith.cmpf oge, %28, %35 : vector<16x16xf32>
    %cst_19 = arith.constant 0.000000e+00 : f32
    %37 = vector.broadcast %cst_19 : f32 to vector<16x16xf32>
    %38 = arith.select %36, %34, %37 : vector<16x16xi1>, vector<16x16xf32>
    %cst_20 = arith.constant dense<0.000000e+00> : vector<16xf32>
    %39 = vector.multi_reduction <add>, %38, %cst_20 [1] : vector<16x16xf32> to vector<16xf32>
    %40 = vector.shape_cast %39 : vector<16xf32> to vector<16x1xf32>
    %cst_21 = arith.constant 1.000000e-30 : f32
    %41 = vector.broadcast %cst_21 : f32 to vector<16x1xf32>
    %42 = arith.maximumf %40, %41 : vector<16x1xf32>
    %43 = tpu.reciprocal %42 : vector<16x1xf32> -> vector<16x1xf32>
    %44 = vector.broadcast %43 : vector<16x1xf32> to vector<16x16xf32>
    %45 = arith.mulf %38, %44 : vector<16x16xf32>
    %46 = arith.truncf %45 : vector<16x16xf32> to vector<16x16xbf16>
    %47 = arith.truncf %17 : vector<16x128xf32> to vector<16x128xbf16>
    %cst_22 = arith.constant dense<0.000000e+00> : vector<16x128xf32>
    %48 = tpu.matmul %46, %47, %cst_22 {dimension_numbers = #tpu.dot_dimension_numbers<[1], [0], [0], [1], [0, 0, 1, 1], [], []>} : vector<16x16xbf16>, vector<16x128xbf16>, vector<16x128xf32> -> vector<16x128xf32>
    %49 = arith.truncf %48 : vector<16x128xf32> to vector<16x128xbf16>
    %c0_23 = arith.constant 0 : index
    %c0_24 = arith.constant 0 : index
    %50 = vector.load %arg6[%c0_23, %c0_24] : memref<128x128xbf16, #tpu.memory_space<vmem>>, vector<128x128xbf16>
    %cst_25 = arith.constant dense<0.000000e+00> : vector<16x128xf32>
    %51 = tpu.matmul %49, %50, %cst_25 {dimension_numbers = #tpu.dot_dimension_numbers<[1], [0], [0], [1], [0, 0, 1, 1], [], []>} : vector<16x128xbf16>, vector<128x128xbf16>, vector<16x128xf32> -> vector<16x128xf32>
    %52 = arith.addf %11, %51 : vector<16x128xf32>
    %cst_26 = arith.constant dense<0.000000e+00> : vector<16xf32>
    %53 = vector.multi_reduction <add>, %52, %cst_26 [1] : vector<16x128xf32> to vector<16xf32>
    %54 = vector.shape_cast %53 : vector<16xf32> to vector<16x1xf32>
    %cst_27 = arith.constant 1.280000e+02 : f32
    %55 = vector.broadcast %cst_27 : f32 to vector<16x1xf32>
    %56 = arith.divf %54, %55 : vector<16x1xf32>
    %57 = vector.broadcast %56 : vector<16x1xf32> to vector<16x128xf32>
    %58 = arith.subf %52, %57 : vector<16x128xf32>
    %59 = arith.mulf %58, %58 : vector<16x128xf32>
    %cst_28 = arith.constant dense<0.000000e+00> : vector<16xf32>
    %60 = vector.multi_reduction <add>, %59, %cst_28 [1] : vector<16x128xf32> to vector<16xf32>
    %61 = vector.shape_cast %60 : vector<16xf32> to vector<16x1xf32>
    %cst_29 = arith.constant 1.280000e+02 : f32
    %62 = vector.broadcast %cst_29 : f32 to vector<16x1xf32>
    %63 = arith.divf %61, %62 : vector<16x1xf32>
    %64 = vector.broadcast %56 : vector<16x1xf32> to vector<16x128xf32>
    %65 = arith.subf %52, %64 : vector<16x128xf32>
    %cst_30 = arith.constant 9.99999974E-6 : f32
    %66 = vector.broadcast %cst_30 : f32 to vector<16x1xf32>
    %67 = arith.addf %63, %66 : vector<16x1xf32>
    %68 = math.rsqrt %67 : vector<16x1xf32>
    %69 = vector.broadcast %68 : vector<16x1xf32> to vector<16x128xf32>
    %70 = arith.mulf %65, %69 : vector<16x128xf32>
    %c0_31 = arith.constant 0 : index
    %c0_32 = arith.constant 0 : index
    %71 = vector.load %arg7[%c0_31, %c0_32] : memref<1x128xf32, #tpu.memory_space<vmem>>, vector<1x128xf32>
    %72 = vector.broadcast %71 : vector<1x128xf32> to vector<16x128xf32>
    %73 = arith.mulf %70, %72 : vector<16x128xf32>
    %c0_33 = arith.constant 0 : index
    %c0_34 = arith.constant 0 : index
    %74 = vector.load %arg8[%c0_33, %c0_34] : memref<1x128xf32, #tpu.memory_space<vmem>>, vector<1x128xf32>
    %75 = vector.broadcast %74 : vector<1x128xf32> to vector<16x128xf32>
    %76 = arith.addf %73, %75 : vector<16x128xf32>
    %77 = arith.truncf %76 : vector<16x128xf32> to vector<16x128xbf16>
    %c0_35 = arith.constant 0 : index
    %c0_36 = arith.constant 0 : index
    %78 = vector.load %arg9[%c0_35, %c0_36] : memref<128x256xbf16, #tpu.memory_space<vmem>>, vector<128x256xbf16>
    %cst_37 = arith.constant dense<0.000000e+00> : vector<16x256xf32>
    %79 = tpu.matmul %77, %78, %cst_37 {dimension_numbers = #tpu.dot_dimension_numbers<[1], [0], [0], [1], [0, 0, 1, 1], [], []>} : vector<16x128xbf16>, vector<128x256xbf16>, vector<16x256xf32> -> vector<16x256xf32>
    %c0_38 = arith.constant 0 : index
    %c0_39 = arith.constant 0 : index
    %80 = vector.load %arg10[%c0_38, %c0_39] : memref<1x256xf32, #tpu.memory_space<vmem>>, vector<1x256xf32>
    %81 = vector.broadcast %80 : vector<1x256xf32> to vector<16x256xf32>
    %82 = arith.addf %79, %81 : vector<16x256xf32>
    %83 = arith.mulf %82, %82 : vector<16x256xf32>
    %84 = arith.mulf %82, %83 : vector<16x256xf32>
    %cst_40 = arith.constant 4.471500e-02 : f32
    %85 = vector.broadcast %cst_40 : f32 to vector<16x256xf32>
    %86 = arith.mulf %85, %84 : vector<16x256xf32>
    %87 = arith.addf %82, %86 : vector<16x256xf32>
    %cst_41 = arith.constant 0.797884583 : f32
    %88 = vector.broadcast %cst_41 : f32 to vector<16x256xf32>
    %89 = arith.mulf %88, %87 : vector<16x256xf32>
    %90 = math.tanh %89 : vector<16x256xf32>
    %cst_42 = arith.constant 1.000000e+00 : f32
    %91 = vector.broadcast %cst_42 : f32 to vector<16x256xf32>
    %92 = arith.addf %91, %90 : vector<16x256xf32>
    %cst_43 = arith.constant 5.000000e-01 : f32
    %93 = vector.broadcast %cst_43 : f32 to vector<16x256xf32>
    %94 = arith.mulf %93, %92 : vector<16x256xf32>
    %95 = arith.mulf %82, %94 : vector<16x256xf32>
    %96 = arith.truncf %95 : vector<16x256xf32> to vector<16x256xbf16>
    %c0_44 = arith.constant 0 : index
    %c0_45 = arith.constant 0 : index
    %97 = vector.load %arg11[%c0_44, %c0_45] : memref<256x128xbf16, #tpu.memory_space<vmem>>, vector<256x128xbf16>
    %cst_46 = arith.constant dense<0.000000e+00> : vector<16x128xf32>
    %98 = tpu.matmul %96, %97, %cst_46 {dimension_numbers = #tpu.dot_dimension_numbers<[1], [0], [0], [1], [0, 0, 1, 1], [], []>} : vector<16x256xbf16>, vector<256x128xbf16>, vector<16x128xf32> -> vector<16x128xf32>
    %c0_47 = arith.constant 0 : index
    %c0_48 = arith.constant 0 : index
    %99 = vector.load %arg12[%c0_47, %c0_48] : memref<1x128xf32, #tpu.memory_space<vmem>>, vector<1x128xf32>
    %100 = vector.broadcast %99 : vector<1x128xf32> to vector<16x128xf32>
    %101 = arith.addf %98, %100 : vector<16x128xf32>
    %102 = arith.addf %76, %101 : vector<16x128xf32>
    %cst_49 = arith.constant dense<0.000000e+00> : vector<16xf32>
    %103 = vector.multi_reduction <add>, %102, %cst_49 [1] : vector<16x128xf32> to vector<16xf32>
    %104 = vector.shape_cast %103 : vector<16xf32> to vector<16x1xf32>
    %cst_50 = arith.constant 1.280000e+02 : f32
    %105 = vector.broadcast %cst_50 : f32 to vector<16x1xf32>
    %106 = arith.divf %104, %105 : vector<16x1xf32>
    %107 = vector.broadcast %106 : vector<16x1xf32> to vector<16x128xf32>
    %108 = arith.subf %102, %107 : vector<16x128xf32>
    %109 = arith.mulf %108, %108 : vector<16x128xf32>
    %cst_51 = arith.constant dense<0.000000e+00> : vector<16xf32>
    %110 = vector.multi_reduction <add>, %109, %cst_51 [1] : vector<16x128xf32> to vector<16xf32>
    %111 = vector.shape_cast %110 : vector<16xf32> to vector<16x1xf32>
    %cst_52 = arith.constant 1.280000e+02 : f32
    %112 = vector.broadcast %cst_52 : f32 to vector<16x1xf32>
    %113 = arith.divf %111, %112 : vector<16x1xf32>
    %114 = vector.broadcast %106 : vector<16x1xf32> to vector<16x128xf32>
    %115 = arith.subf %102, %114 : vector<16x128xf32>
    %cst_53 = arith.constant 9.99999974E-6 : f32
    %116 = vector.broadcast %cst_53 : f32 to vector<16x1xf32>
    %117 = arith.addf %113, %116 : vector<16x1xf32>
    %118 = math.rsqrt %117 : vector<16x1xf32>
    %119 = vector.broadcast %118 : vector<16x1xf32> to vector<16x128xf32>
    %120 = arith.mulf %115, %119 : vector<16x128xf32>
    %c0_54 = arith.constant 0 : index
    %c0_55 = arith.constant 0 : index
    %121 = vector.load %arg13[%c0_54, %c0_55] : memref<1x128xf32, #tpu.memory_space<vmem>>, vector<1x128xf32>
    %122 = vector.broadcast %121 : vector<1x128xf32> to vector<16x128xf32>
    %123 = arith.mulf %120, %122 : vector<16x128xf32>
    %c0_56 = arith.constant 0 : index
    %c0_57 = arith.constant 0 : index
    %124 = vector.load %arg14[%c0_56, %c0_57] : memref<1x128xf32, #tpu.memory_space<vmem>>, vector<1x128xf32>
    %125 = vector.broadcast %124 : vector<1x128xf32> to vector<16x128xf32>
    %126 = arith.addf %123, %125 : vector<16x128xf32>
    %127 = arith.truncf %126 : vector<16x128xf32> to vector<16x128xbf16>
    %c0_58 = arith.constant 0 : index
    %c0_59 = arith.constant 0 : index
    %128 = vector.load %arg15[%c0_58, %c0_59] : memref<128x128xbf16, #tpu.memory_space<vmem>>, vector<128x128xbf16>
    %cst_60 = arith.constant dense<0.000000e+00> : vector<16x128xf32>
    %129 = tpu.matmul %127, %128, %cst_60 {dimension_numbers = #tpu.dot_dimension_numbers<[1], [0], [0], [1], [0, 0, 1, 1], [], []>} : vector<16x128xbf16>, vector<128x128xbf16>, vector<16x128xf32> -> vector<16x128xf32>
    %c0_61 = arith.constant 0 : index
    %c0_62 = arith.constant 0 : index
    %130 = vector.load %arg16[%c0_61, %c0_62] : memref<1x128xf32, #tpu.memory_space<vmem>>, vector<1x128xf32>
    %131 = vector.broadcast %130 : vector<1x128xf32> to vector<16x128xf32>
    %132 = arith.addf %129, %131 : vector<16x128xf32>
    %c0_63 = arith.constant 0 : index
    %c0_64 = arith.constant 0 : index
    %133 = vector.load %arg17[%c0_63, %c0_64] : memref<16x128xf32, #tpu.memory_space<vmem>>, vector<16x128xf32>
    tpu.vector_store %arg17[%c0_63, %c0_64], %132 {strides = array<i32>} : memref<16x128xf32, #tpu.memory_space<vmem>>, vector<16x128xf32>,
    return
  }
}

</mosaic_0001>

<llo_original>
// kernel: forward.1
$region0: #{forward.1}
  #allocation0 [shape = 'u32[]', space=smem, size = 0x4, offset = 0x4, fixed_abs, tag = 'smem constant byte address 0x4 - core index']
  #allocation1 [shape = 'u32[72,128]{1,0:T(1,128)}', space=vmem, size = 0x9000, scoped, tag = 'internal scratch']
  %s0 = inlined_call_operand.vmem [shape: s32[16,1], index: 0, kind: input, shape index: {}]
  %s1 = inlined_call_operand.vmem [shape: f32[1,16], index: 1, kind: input, shape index: {}]
  %s2 = inlined_call_operand.vmem [shape: f32[16,16], index: 2, kind: input, shape index: {}]
  %s3 = inlined_call_operand.hbm [shape: f32[16,128], index: 3, kind: input, shape index: {}]
  %s4 = inlined_call_operand.hbm [shape: bf16[64,128], index: 4, kind: input, shape index: {}]
  %s5 = inlined_call_operand.hbm [shape: bf16[128,384], index: 5, kind: input, shape index: {}]
  %s6 = inlined_call_operand.hbm [shape: bf16[128,128], index: 6, kind: input, shape index: {}]
  %s7 = inlined_call_operand.vmem [shape: f32[1,128], index: 7, kind: input, shape index: {}]
  %s8 = inlined_call_operand.vmem [shape: f32[1,128], index: 8, kind: input, shape index: {}]
  %s9 = inlined_call_operand.hbm [shape: bf16[128,256], index: 9, kind: input, shape index: {}]
  %s10 = inlined_call_operand.vmem [shape: f32[1,256], index: 10, kind: input, shape index: {}]
  %s11 = inlined_call_operand.hbm [shape: bf16[256,128], index: 11, kind: input, shape index: {}]
  %s12 = inlined_call_operand.vmem [shape: f32[1,128], index: 12, kind: input, shape index: {}]
  %s13 = inlined_call_operand.vmem [shape: f32[1,128], index: 13, kind: input, shape index: {}]
  %s14 = inlined_call_operand.vmem [shape: f32[1,128], index: 14, kind: input, shape index: {}]
  %s15 = inlined_call_operand.hbm [shape: bf16[128,128], index: 15, kind: input, shape index: {}]
  %s16 = inlined_call_operand.vmem [shape: f32[1,128], index: 16, kind: input, shape index: {}]
  %s17 = inlined_call_operand.vmem [shape: f32[16,128], index: 17, kind: output, shape index: {}]
  %s18 = sld [smem:[#allocation0]]
  $region106: #{forward.1} parent=0
    _
  %s20 = ssub.s32 1, %s18
  %s21 = scalar_select 0, %s20, %s18
  $region1: #{forward.1} parent=0
    #allocation2 [shape = 'u8[8192]{0}', space=vmem, size = 0x2000, scoped, tag = 'input window, operand 3, single buffered']
    #allocation3 [shape = 's32[1]{0}', space=sflag, size = 0x4, scoped, tag = 'scoped memory for forward.1']
    #allocation4 [shape = 'u8[16384]{0}', space=vmem, size = 0x4000, scoped, tag = 'input window, operand 4, single buffered']
    #allocation5 [shape = 's32[1]{0}', space=sflag, size = 0x4, scoped, tag = 'scoped memory for forward.1']
    #allocation6 [shape = 'u8[98304]{0}', space=vmem, size = 0x18000, scoped, tag = 'input window, operand 5, single buffered']
    #allocation7 [shape = 'u8[32768]{0}', space=vmem, size = 0x8000, scoped, tag = 'input window, operand 6, single buffered']
    #allocation8 [shape = 's32[1]{0}', space=sflag, size = 0x4, scoped, tag = 'scoped memory for forward.1']
    #allocation9 [shape = 'u8[65536]{0}', space=vmem, size = 0x10000, scoped, tag = 'input window, operand 9, single buffered']
    #allocation10 [shape = 'u8[65536]{0}', space=vmem, size = 0x10000, scoped, tag = 'input window, operand 11, single buffered']
    #allocation11 [shape = 's32[1]{0}', space=sflag, size = 0x4, scoped, tag = 'scoped memory for forward.1']
    #allocation12 [shape = 'u8[32768]{0}', space=vmem, size = 0x8000, scoped, tag = 'input window, operand 15, single buffered']
    %22 = vsyncpa [#allocation3], 0
    %23 = vsyncpa [#allocation5], 0
    %24 = vsyncpa [#allocation8], 0
    %25 = vsyncpa [#allocation11], 0
    // Predicated region
    $region2: #{forward.1} parent=1 // pred_check
      _
    $region3: #{forward.1} parent=1 // pred_check_branch
      %27 = sbr.rel (0) target = $region5
    $region4: #{forward.1} parent=1 // pred_region
      _
    $region5: #{forward.1} parent=1 // pred_fallthru
      _
    // Predicated region
    $region6: #{forward.1} parent=1 // pred_check
      _
    $region7: #{forward.1} parent=1 // pred_check_branch
      %29 = sbr.rel (0) target = $region9
    $region8: #{forward.1} parent=1 // pred_region
      _
    $region9: #{forward.1} parent=1 // pred_fallthru
      _
    // Predicated region
    $region10: #{forward.1} parent=1 // pred_check
      _
    $region11: #{forward.1} parent=1 // pred_check_branch
      %31 = sbr.rel (0) target = $region13
    $region12: #{forward.1} parent=1 // pred_region
      _
    $region13: #{forward.1} parent=1 // pred_fallthru
      _
    // Predicated region
    $region14: #{forward.1} parent=1 // pred_check
      _
    $region15: #{forward.1} parent=1 // pred_check_branch
      %33 = sbr.rel (0) target = $region17
    $region16: #{forward.1} parent=1 // pred_region
      %35 = vsyncadd [#allocation3], 0
      %s36 = sshll.u32 %s3, 4
      %s37 = int_to_ptr.hbm [resolvable:$true] %s36
      %s38 = sshll.u32 [#allocation2], 4
      %s39 = int_to_ptr.vmem [resolvable:$true] %s38
      %44 = dma.hbm_to_vmem [thread:$0]  %s37, 256, %s39, [#allocation3], 128, 128, 8
    $region17: #{forward.1} parent=1 // pred_fallthru
      _
    // Predicated region
    $region18: #{forward.1} parent=1 // pred_check
      _
    $region19: #{forward.1} parent=1 // pred_check_branch
      %46 = sbr.rel (0) target = $region21
    $region20: #{forward.1} parent=1 // pred_region
      %48 = vsyncadd [#allocation5], 0
      %s49 = sshll.u32 %s4, 4
      %s50 = int_to_ptr.hbm [resolvable:$true] %s49
      %s51 = sshll.u32 [#allocation4], 4
      %s52 = int_to_ptr.vmem [resolvable:$true] %s51
      %57 = dma.hbm_to_vmem [thread:$0]  %s50, 512, %s52, [#allocation5], 64, 64, 4
    $region21: #{forward.1} parent=1 // pred_fallthru
      _
    // Predicated region
    $region22: #{forward.1} parent=1 // pred_check
      _
    $region23: #{forward.1} parent=1 // pred_check_branch
      %59 = sbr.rel (0) target = $region25
    $region24: #{forward.1} parent=1 // pred_region
      %61 = vsyncadd [#allocation5], 0
      %s62 = sshll.u32 %s5, 4
      %s63 = int_to_ptr.hbm [resolvable:$true] %s62
      %s64 = sshll.u32 [#allocation6], 4
      %s65 = int_to_ptr.vmem [resolvable:$true] %s64
      %70 = dma.hbm_to_vmem [thread:$0]  %s63, 3072, %s65, [#allocation5], 192, 192, 12
    $region25: #{forward.1} parent=1 // pred_fallthru
      _
    // Predicated region
    $region26: #{forward.1} parent=1 // pred_check
      _
    $region27: #{forward.1} parent=1 // pred_check_branch
      %72 = sbr.rel (0) target = $region29
    $region28: #{forward.1} parent=1 // pred_region
      %74 = vsyncadd [#allocation8], 0
      %s75 = sshll.u32 %s6, 4
      %s76 = int_to_ptr.hbm [resolvable:$true] %s75
      %s77 = sshll.u32 [#allocation7], 4
      %s78 = int_to_ptr.vmem [resolvable:$true] %s77
      %83 = dma.hbm_to_vmem [thread:$0]  %s76, 1024, %s78, [#allocation8], 64, 64, 4
    $region29: #{forward.1} parent=1 // pred_fallthru
      _
    // Predicated region
    $region30: #{forward.1} parent=1 // pred_check
      _
    $region31: #{forward.1} parent=1 // pred_check_branch
      %85 = sbr.rel (0) target = $region33
    $region32: #{forward.1} parent=1 // pred_region
      _
    $region33: #{forward.1} parent=1 // pred_fallthru
      _
    // Predicated region
    $region34: #{forward.1} parent=1 // pred_check
      _
    $region35: #{forward.1} parent=1 // pred_check_branch
      %87 = sbr.rel (0) target = $region37
    $region36: #{forward.1} parent=1 // pred_region
      _
    $region37: #{forward.1} parent=1 // pred_fallthru
      _
    // Predicated region
    $region38: #{forward.1} parent=1 // pred_check
      _
    $region39: #{forward.1} parent=1 // pred_check_branch
      %89 = sbr.rel (0) target = $region41
    $region40: #{forward.1} parent=1 // pred_region
      %91 = vsyncadd [#allocation8], 0
      %s92 = sshll.u32 %s9, 4
      %s93 = int_to_ptr.hbm [resolvable:$true] %s92
      %s94 = sshll.u32 [#allocation9], 4
      %s95 = int_to_ptr.vmem [resolvable:$true] %s94
      %100 = dma.hbm_to_vmem [thread:$0]  %s93, 2048, %s95, [#allocation8], 128, 128, 8
    $region41: #{forward.1} parent=1 // pred_fallthru
      _
    // Predicated region
    $region42: #{forward.1} parent=1 // pred_check
      _
    $region43: #{forward.1} parent=1 // pred_check_branch
      %102 = sbr.rel (0) target = $region45
    $region44: #{forward.1} parent=1 // pred_region
      _
    $region45: #{forward.1} parent=1 // pred_fallthru
      _
    // Predicated region
    $region46: #{forward.1} parent=1 // pred_check
      _
    $region47: #{forward.1} parent=1 // pred_check_branch
      %104 = sbr.rel (0) target = $region49
    $region48: #{forward.1} parent=1 // pred_region
      %106 = vsyncadd [#allocation11], 0
      %s107 = sshll.u32 %s11, 4
      %s108 = int_to_ptr.hbm [resolvable:$true] %s107
      %s109 = sshll.u32 [#allocation10], 4
      %s110 = int_to_ptr.vmem [resolvable:$true] %s109
      %115 = dma.hbm_to_vmem [thread:$0]  %s108, 2048, %s110, [#allocation11], 64, 64, 4
    $region49: #{forward.1} parent=1 // pred_fallthru
      _
    // Predicated region
    $region50: #{forward.1} parent=1 // pred_check
      _
    $region51: #{forward.1} parent=1 // pred_check_branch
      %117 = sbr.rel (0) target = $region53
    $region52: #{forward.1} parent=1 // pred_region
      _
    $region53: #{forward.1} parent=1 // pred_fallthru
      _
    // Predicated region
    $region54: #{forward.1} parent=1 // pred_check
      _
    $region55: #{forward.1} parent=1 // pred_check_branch
      %119 = sbr.rel (0) target = $region57
    $region56: #{forward.1} parent=1 // pred_region
      _
    $region57: #{forward.1} parent=1 // pred_fallthru
      _
    // Predicated region
    $region58: #{forward.1} parent=1 // pred_check
      _
    $region59: #{forward.1} parent=1 // pred_check_branch
      %121 = sbr.rel (0) target = $region61
    $region60: #{forward.1} parent=1 // pred_region
      _
    $region61: #{forward.1} parent=1 // pred_fallthru
      _
    // Predicated region
    $region62: #{forward.1} parent=1 // pred_check
      _
    $region63: #{forward.1} parent=1 // pred_check_branch
      %123 = sbr.rel (0) target = $region65
    $region64: #{forward.1} parent=1 // pred_region
      %125 = vsyncadd [#allocation11], 0
      %s126 = sshll.u32 %s15, 4
      %s127 = int_to_ptr.hbm [resolvable:$true] %s126
      %s128 = sshll.u32 [#allocation12], 4
      %s129 = int_to_ptr.vmem [resolvable:$true] %s128
      %134 = dma.hbm_to_vmem [thread:$0]  %s127, 1024, %s129, [#allocation11], 64, 64, 4
    $region65: #{forward.1} parent=1 // pred_fallthru
      _
    // Predicated region
    $region66: #{forward.1} parent=1 // pred_check
      _
    $region67: #{forward.1} parent=1 // pred_check_branch
      %136 = sbr.rel (0) target = $region69
    $region68: #{forward.1} parent=1 // pred_region
      _
    $region69: #{forward.1} parent=1 // pred_fallthru
      _
    // Predicated region
    $region70: #{forward.1} parent=1 // pred_check
      _
    $region71: #{forward.1} parent=1 // pred_check_branch
      %138 = sbr.rel (0) target = $region73
    $region72: #{forward.1} parent=1 // pred_region
      %140 = dma.done [#allocation3], 256
    $region73: #{forward.1} parent=1 // pred_fallthru
      _
    // Predicated region
    $region74: #{forward.1} parent=1 // pred_check
      _
    $region75: #{forward.1} parent=1 // pred_check_branch
      %142 = sbr.rel (0) target = $region77
    $region76: #{forward.1} parent=1 // pred_region
      %144 = dma.done [#allocation5], 512
    $region77: #{forward.1} parent=1 // pred_fallthru
      _
    // Predicated region
    $region78: #{forward.1} parent=1 // pred_check
      _
    $region79: #{forward.1} parent=1 // pred_check_branch
      %146 = sbr.rel (0) target = $region81
    $region80: #{forward.1} parent=1 // pred_region
      %148 = dma.done [#allocation5], 3072
    $region81: #{forward.1} parent=1 // pred_fallthru
      _
    // Predicated region
    $region82: #{forward.1} parent=1 // pred_check
      _
    $region83: #{forward.1} parent=1 // pred_check_branch
      %150 = sbr.rel (0) target = $region85
    $region84: #{forward.1} parent=1 // pred_region
      %152 = dma.done [#allocation8], 1024
    $region85: #{forward.1} parent=1 // pred_fallthru
      _
    // Predicated region
    $region86: #{forward.1} parent=1 // pred_check
      _
    $region87: #{forward.1} parent=1 // pred_check_branch
      %154 = sbr.rel (0) target = $region89
    $region88: #{forward.1} parent=1 // pred_region
      %156 = dma.done [#allocation8], 2048
    $region89: #{forward.1} parent=1 // pred_fallthru
      _
    // Predicated region
    $region90: #{forward.1} parent=1 // pred_check
      _
    $region91: #{forward.1} parent=1 // pred_check_branch
      %158 = sbr.rel (0) target = $region93
    $region92: #{forward.1} parent=1 // pred_region
      %160 = dma.done [#allocation11], 2048
    $region93: #{forward.1} parent=1 // pred_fallthru
      _
    // Predicated region
    $region94: #{forward.1} parent=1 // pred_check
      _
    $region95: #{forward.1} parent=1 // pred_check_branch
      %162 = sbr.rel (0) target = $region97
    $region96: #{forward.1} parent=1 // pred_region
      %164 = dma.done [#allocation11], 1024
    $region97: #{forward.1} parent=1 // pred_fallthru
      _
    %v166 = vld [vmem:[%s0] sm:$0xff]
    %v167 = vld [vmem:[%s0 + $0x8] sm:$0xff]
    %v168 = vlaneseq
    %v169 = vand.u32 %v168, 127
    %170 = vset.pattern.permute.xlu0 0
    %171 = vperm.xlu0 %170, %v166
    %v172 = vpop.permute.xlu0 %171
    %173 = vset.pattern.permute.xlu0 0
    %174 = vperm.xlu0 %173, %v167
    %v175 = vpop.permute.xlu0 %174
    %vm176 = vcmp.eq.s32.totalorder %v169, %v172
    %vm177 = vcmp.eq.s32.totalorder %v169, %v175
    %v178 = vsel %vm176, 1.0, 0.0
    %v179 = vsel %vm177, 1.0, 0.0
    %v180 = vpack.c.bf16 %v179, %v178
    %v181 = vld [vmem:[#allocation4] sm:$0xf]
    %v182 = vld [vmem:[#allocation4 + $0x4] sm:$0xf]
    %v183 = vld [vmem:[#allocation4 + $0x8] sm:$0xf]
    %v184 = vld [vmem:[#allocation4 + $0xc] sm:$0xf]
    %v185 = vld [vmem:[#allocation4 + $0x10] sm:$0xf]
    %v186 = vld [vmem:[#allocation4 + $0x14] sm:$0xf]
    %v187 = vld [vmem:[#allocation4 + $0x18] sm:$0xf]
    %v188 = vld [vmem:[#allocation4 + $0x1c] sm:$0xf]
    %v189 = vld [vmem:[#allocation2] sm:$0xff]
    %v190 = vld [vmem:[#allocation2 + $0x8] sm:$0xff]
    %v199 = vunpack.c.l.b16 %v181
    %v200 = vunpack.c.l.b16 %v182
    %v201 = vunpack.c.l.b16 %v183
    %v202 = vunpack.c.l.b16 %v184
    %v203 = vunpack.c.l.b16 %v185
    %v204 = vunpack.c.l.b16 %v186
    %v205 = vunpack.c.l.b16 %v187
    %v206 = vunpack.c.l.b16 %v188
    %v207 = vpack.c.b16 %v200, %v199
    %v208 = vpack.c.b16 %v202, %v201
    %v209 = vpack.c.b16 %v204, %v203
    %v210 = vpack.c.b16 %v206, %v205
    %vm215 = vcmask 523264
    %v217 = vsel %vm215, %v180, 0
    %219 = vmatpush.bf16.msra.mxu0 0
    %220 = vmatpush.bf16.msra.mxu0 0
    %221 = vmatpush.bf16.msra.mxu0 0
    %222 = vmatpush.bf16.msra.mxu0 0
    %223 = vmatpush.bf16.msra.mxu0 %v210
    %224 = vmatpush.bf16.msra.mxu0 %v209
    %225 = vmatpush.bf16.msra.mxu0 %v208
    %226 = vmatpush.bf16.msra.mxu0 %v207
    %227 = vmatmul.bf16.gmra.mxu0 %v217
    %v228 = vpop.f32.mrf.mxu0
    %v229 = vadd.f32 %v189, %v228
    %v230 = vpop.f32.mrf.mxu0
    %v231 = vadd.f32 %v190, %v230
    %232 = vdwg.mxu0
    %v233 = vpack.c.bf16 %v231, %v229
    %v234 = vld [vmem:[#allocation6] sm:$0xff]
    %v235 = vld [vmem:[#allocation6 + $0x8] sm:$0xf]
    %v236 = vld [vmem:[#allocation6 + $0xc] sm:$0xff]
    %v237 = vld [vmem:[#allocation6 + $0x14] sm:$0xf]
    %v238 = vld [vmem:[#allocation6 + $0x18] sm:$0xff]
    %v239 = vld [vmem:[#allocation6 + $0x20] sm:$0xf]
    %v240 = vld [vmem:[#allocation6 + $0x24] sm:$0xff]
    %v241 = vld [vmem:[#allocation6 + $0x2c] sm:$0xf]
    %v242 = vld [vmem:[#allocation6 + $0x30] sm:$0xff]
    %v243 = vld [vmem:[#allocation6 + $0x38] sm:$0xf]
    %v244 = vld [vmem:[#allocation6 + $0x3c] sm:$0xff]
    %v245 = vld [vmem:[#allocation6 + $0x44] sm:$0xf]
    %v246 = vld [vmem:[#allocation6 + $0x48] sm:$0xff]
    %v247 = vld [vmem:[#allocation6 + $0x50] sm:$0xf]
    %v248 = vld [vmem:[#allocation6 + $0x54] sm:$0xff]
    %v249 = vld [vmem:[#allocation6 + $0x5c] sm:$0xf]
    %v250 = vld [vmem:[#allocation6 + $0x60] sm:$0xff]
    %v251 = vld [vmem:[#allocation6 + $0x68] sm:$0xf]
    %v252 = vld [vmem:[#allocation6 + $0x6c] sm:$0xff]
    %v253 = vld [vmem:[#allocation6 + $0x74] sm:$0xf]
    %v254 = vld [vmem:[#allocation6 + $0x78] sm:$0xff]
    %v255 = vld [vmem:[#allocation6 + $0x80] sm:$0xf]
    %v256 = vld [vmem:[#allocation6 + $0x84] sm:$0xff]
    %v257 = vld [vmem:[#allocation6 + $0x8c] sm:$0xf]
    %v258 = vld [vmem:[#allocation6 + $0x90] sm:$0xff]
    %v259 = vld [vmem:[#allocation6 + $0x98] sm:$0xf]
    %v260 = vld [vmem:[#allocation6 + $0x9c] sm:$0xff]
    %v261 = vld [vmem:[#allocation6 + $0xa4] sm:$0xf]
    %v262 = vld [vmem:[#allocation6 + $0xa8] sm:$0xff]
    %v263 = vld [vmem:[#allocation6 + $0xb0] sm:$0xf]
    %v264 = vld [vmem:[#allocation6 + $0xb4] sm:$0xff]
    %v265 = vld [vmem:[#allocation6 + $0xbc] sm:$0xf]
    %v298 = vunpack.c.l.b16 %v234
    %v299 = vunpack.c.h.b16 %v234
    %v300 = vunpack.c.l.b16 %v235
    %v301 = vunpack.c.l.b16 %v236
    %v302 = vunpack.c.h.b16 %v236
    %v303 = vunpack.c.l.b16 %v237
    %v304 = vunpack.c.l.b16 %v238
    %v305 = vunpack.c.h.b16 %v238
    %v306 = vunpack.c.l.b16 %v239
    %v307 = vunpack.c.l.b16 %v240
    %v308 = vunpack.c.h.b16 %v240
    %v309 = vunpack.c.l.b16 %v241
    %v310 = vunpack.c.l.b16 %v242
    %v311 = vunpack.c.h.b16 %v242
    %v312 = vunpack.c.l.b16 %v243
    %v313 = vunpack.c.l.b16 %v244
    %v314 = vunpack.c.h.b16 %v244
    %v315 = vunpack.c.l.b16 %v245
    %v316 = vunpack.c.l.b16 %v246
    %v317 = vunpack.c.h.b16 %v246
    %v318 = vunpack.c.l.b16 %v247
    %v319 = vunpack.c.l.b16 %v248
    %v320 = vunpack.c.h.b16 %v248
    %v321 = vunpack.c.l.b16 %v249
    %v322 = vunpack.c.l.b16 %v250
    %v323 = vunpack.c.h.b16 %v250
    %v324 = vunpack.c.l.b16 %v251
    %v325 = vunpack.c.l.b16 %v252
    %v326 = vunpack.c.h.b16 %v252
    %v327 = vunpack.c.l.b16 %v253
    %v328 = vunpack.c.l.b16 %v254
    %v329 = vunpack.c.h.b16 %v254
    %v330 = vunpack.c.l.b16 %v255
    %v331 = vunpack.c.l.b16 %v256
    %v332 = vunpack.c.h.b16 %v256
    %v333 = vunpack.c.l.b16 %v257
    %v334 = vunpack.c.l.b16 %v258
    %v335 = vunpack.c.h.b16 %v258
    %v336 = vunpack.c.l.b16 %v259
    %v337 = vunpack.c.l.b16 %v260
    %v338 = vunpack.c.h.b16 %v260
    %v339 = vunpack.c.l.b16 %v261
    %v340 = vunpack.c.l.b16 %v262
    %v341 = vunpack.c.h.b16 %v262
    %v342 = vunpack.c.l.b16 %v263
    %v343 = vunpack.c.l.b16 %v264
    %v344 = vunpack.c.h.b16 %v264
    %v345 = vunpack.c.l.b16 %v265
    %v346 = vpack.c.b16 %v301, %v298
    %v347 = vpack.c.b16 %v302, %v299
    %v348 = vpack.c.b16 %v303, %v300
    %v349 = vpack.c.b16 %v307, %v304
    %v350 = vpack.c.b16 %v308, %v305
    %v351 = vpack.c.b16 %v309, %v306
    %v352 = vpack.c.b16 %v313, %v310
    %v353 = vpack.c.b16 %v314, %v311
    %v354 = vpack.c.b16 %v315, %v312
    %v355 = vpack.c.b16 %v319, %v316
    %v356 = vpack.c.b16 %v320, %v317
    %v357 = vpack.c.b16 %v321, %v318
    %v358 = vpack.c.b16 %v325, %v322
    %v359 = vpack.c.b16 %v326, %v323
    %v360 = vpack.c.b16 %v327, %v324
    %v361 = vpack.c.b16 %v331, %v328
    %v362 = vpack.c.b16 %v332, %v329
    %v363 = vpack.c.b16 %v333, %v330
    %v364 = vpack.c.b16 %v337, %v334
    %v365 = vpack.c.b16 %v338, %v335
    %v366 = vpack.c.b16 %v339, %v336
    %v367 = vpack.c.b16 %v343, %v340
    %v368 = vpack.c.b16 %v344, %v341
    %v369 = vpack.c.b16 %v345, %v342
    %394 = vmatpush.bf16.msra.mxu0 %v367
    %395 = vmatpush.bf16.msra.mxu0 %v364
    %396 = vmatpush.bf16.msra.mxu0 %v361
    %397 = vmatpush.bf16.msra.mxu0 %v358
    %398 = vmatpush.bf16.msra.mxu0 %v355
    %399 = vmatpush.bf16.msra.mxu0 %v352
    %400 = vmatpush.bf16.msra.mxu0 %v349
    %401 = vmatpush.bf16.msra.mxu0 %v346
    %402 = vmatmul.bf16.gmra.mxu0 %v233
    %v403 = vpop.f32.mrf.mxu0
    %v404 = vadd.f32 0.0, %v403
    %v405 = vpop.f32.mrf.mxu0
    %v406 = vadd.f32 0.0, %v405
    %407 = vdwg.mxu0
    %408 = vmatpush.bf16.msra.mxu0 %v368
    %409 = vmatpush.bf16.msra.mxu0 %v365
    %410 = vmatpush.bf16.msra.mxu0 %v362
    %411 = vmatpush.bf16.msra.mxu0 %v359
    %412 = vmatpush.bf16.msra.mxu0 %v356
    %413 = vmatpush.bf16.msra.mxu0 %v353
    %414 = vmatpush.bf16.msra.mxu0 %v350
    %415 = vmatpush.bf16.msra.mxu0 %v347
    %416 = vmatmul.bf16.gmra.mxu0 %v233
    %v417 = vpop.f32.mrf.mxu0
    %v418 = vadd.f32 0.0, %v417
    %v419 = vpop.f32.mrf.mxu0
    %v420 = vadd.f32 0.0, %v419
    %421 = vdwg.mxu0
    %422 = vmatpush.bf16.msra.mxu0 %v369
    %423 = vmatpush.bf16.msra.mxu0 %v366
    %424 = vmatpush.bf16.msra.mxu0 %v363
    %425 = vmatpush.bf16.msra.mxu0 %v360
    %426 = vmatpush.bf16.msra.mxu0 %v357
    %427 = vmatpush.bf16.msra.mxu0 %v354
    %428 = vmatpush.bf16.msra.mxu0 %v351
    %429 = vmatpush.bf16.msra.mxu0 %v348
    %430 = vmatmul.bf16.gmra.mxu0 %v233
    %v431 = vpop.f32.mrf.mxu0
    %v432 = vadd.f32 0.0, %v431
    %v433 = vpop.f32.mrf.mxu0
    %v434 = vadd.f32 0.0, %v433
    %435 = vdwg.mxu0
    %v436 = vpack.c.bf16 %v406, %v404
    %v437 = vpack.c.bf16 %v420, %v418
    %v438 = vld [vmem:[%s2] sm:$0xff]
    %v439 = vld [vmem:[%s2 + $0x8] sm:$0xff]
    %v440 = vld [vmem:[%s1] sm:$0x1]
    %v441 = vsub.f32 %v440, 1.0
    %v442 = vmul.f32 %v441, 1e+09
    %v444 = vperm.slane %v442, 0
    %v446 = vadd.f32 %v438, %v444
    %v447 = vadd.f32 %v439, %v444
    %448 = vmatpush.bf16.xpose.msra.mxu0 0
    %449 = vmatpush.bf16.xpose.msra.mxu0 0
    %450 = vmatpush.bf16.xpose.msra.mxu0 0
    %451 = vmatpush.bf16.xpose.msra.mxu0 0
    %452 = vmatpush.bf16.xpose.msra.mxu0 0
    %453 = vmatpush.bf16.xpose.msra.mxu0 0
    %454 = vmatpush.bf16.xpose.msra.mxu0 0
    %455 = vmatpush.bf16.xpose.msra.mxu0 %v437
    %456 = vmatmul.bf16.gmra.mxu0 %v436
    %v457 = vpop.f32.mrf.mxu0
    %v458 = vadd.f32 %v446, %v457
    %v459 = vpop.f32.mrf.mxu0
    %v460 = vadd.f32 %v447, %v459
    %461 = vdwg.mxu0
    %vm462 = vcmask 130048
    %v463 = vsel %vm462, %v458, -inf
    %464 = vmax.xlane.f32.xlu0 %v463
    %v465 = vpop.xlane.xlu0 %464
    %v466 = vsel %vm462, %v460, -inf
    %467 = vmax.xlane.f32.xlu0 %v466
    %v468 = vpop.xlane.xlu0 %467
    %v469 = vsub.f32 %v458, %v465
    %v470 = vsub.f32 %v460, %v468
    %v471 = vmul.f32 %v469, 1.442695
    %v472 = vpow.pop %v471
    %v473 = vmul.f32 %v470, 1.442695
    %v474 = vpow.pop %v473
    %vm475 = vcmp.ge.f32.partialorder %v446, 0.0
    %vm476 = vcmp.ge.f32.partialorder %v447, 0.0
    %v477 = vsel %vm475, %v472, 0.0
    %v478 = vsel %vm476, %v474, 0.0
    %v479 = vsel %vm462, %v477, 0.0
    %480 = vadd.xlane.f32.xlu0 %v479
    %v481 = vpop.xlane.xlu0 %480
    %v482 = vsel %vm462, %v478, 0.0
    %483 = vadd.xlane.f32.xlu0 %v482
    %v484 = vpop.xlane.xlu0 %483
    %v485 = vmax.f32 %v481, 1e-30
    %v486 = vmax.f32 %v484, 1e-30
    %v487 = vrcp.pop %v485
    %v488 = vmul.f32 %v485, %v487
    %v489 = vsub.f32 1.0, %v488
    %v490 = vmul.f32 %v487, %v489
    %v491 = vadd.f32 %v487, %v490
    %vm492 = vweird.f32 %v485
    %vm493 = vweird.f32 %v487
    %vm494 = vmor %vm492, %vm493
    %v495 = vsel %vm494, %v487, %v491
    %v496 = vand.u32 2147483647, %v485
    %vm497 = vcmp.eq.f32.partialorder %v496, 8.507059e+37
    %v498 = vand.u32 %v485, 2147483648
    %v499 = vor.u32 1.1754944e-38, %v498
    %v500 = vsel %vm497, %v499, %v495
    %v501 = vrcp.pop %v486
    %v502 = vmul.f32 %v486, %v501
    %v503 = vsub.f32 1.0, %v502
    %v504 = vmul.f32 %v501, %v503
    %v505 = vadd.f32 %v501, %v504
    %vm506 = vweird.f32 %v486
    %vm507 = vweird.f32 %v501
    %vm508 = vmor %vm506, %vm507
    %v509 = vsel %vm508, %v501, %v505
    %v510 = vand.u32 2147483647, %v486
    %vm511 = vcmp.eq.f32.partialorder %v510, 8.507059e+37
    %v512 = vand.u32 %v486, 2147483648
    %v513 = vor.u32 1.1754944e-38, %v512
    %v514 = vsel %vm511, %v513, %v509
    %v515 = vmul.f32 %v477, %v500
    %v516 = vmul.f32 %v478, %v514
    %v517 = vpack.c.bf16 %v516, %v515
    %v518 = vpack.c.bf16 %v434, %v432
    %v520 = vsel %vm462, %v517, 0
    %522 = vmatpush.bf16.msra.mxu0 0
    %523 = vmatpush.bf16.msra.mxu0 0
    %524 = vmatpush.bf16.msra.mxu0 0
    %525 = vmatpush.bf16.msra.mxu0 0
    %526 = vmatpush.bf16.msra.mxu0 0
    %527 = vmatpush.bf16.msra.mxu0 0
    %528 = vmatpush.bf16.msra.mxu0 0
    %529 = vmatpush.bf16.msra.mxu0 %v518
    %530 = vmatmul.bf16.gmra.mxu0 %v520
    %v531 = vpop.f32.mrf.mxu0
    %v532 = vadd.f32 0.0, %v531
    %v533 = vpop.f32.mrf.mxu0
    %v534 = vadd.f32 0.0, %v533
    %535 = vdwg.mxu0
    %v536 = vpack.c.bf16 %v534, %v532
    %v537 = vld [vmem:[#allocation7] sm:$0xf]
    %v538 = vld [vmem:[#allocation7 + $0x4] sm:$0xf]
    %v539 = vld [vmem:[#allocation7 + $0x8] sm:$0xf]
    %v540 = vld [vmem:[#allocation7 + $0xc] sm:$0xf]
    %v541 = vld [vmem:[#allocation7 + $0x10] sm:$0xf]
    %v542 = vld [vmem:[#allocation7 + $0x14] sm:$0xf]
    %v543 = vld [vmem:[#allocation7 + $0x18] sm:$0xf]
    %v544 = vld [vmem:[#allocation7 + $0x1c] sm:$0xf]
    %v545 = vld [vmem:[#allocation7 + $0x20] sm:$0xf]
    %v546 = vld [vmem:[#allocation7 + $0x24] sm:$0xf]
    %v547 = vld [vmem:[#allocation7 + $0x28] sm:$0xf]
    %v548 = vld [vmem:[#allocation7 + $0x2c] sm:$0xf]
    %v549 = vld [vmem:[#allocation7 + $0x30] sm:$0xf]
    %v550 = vld [vmem:[#allocation7 + $0x34] sm:$0xf]
    %v551 = vld [vmem:[#allocation7 + $0x38] sm:$0xf]
    %v552 = vld [vmem:[#allocation7 + $0x3c] sm:$0xf]
    %v569 = vunpack.c.l.b16 %v537
    %v570 = vunpack.c.l.b16 %v538
    %v571 = vunpack.c.l.b16 %v539
    %v572 = vunpack.c.l.b16 %v540
    %v573 = vunpack.c.l.b16 %v541
    %v574 = vunpack.c.l.b16 %v542
    %v575 = vunpack.c.l.b16 %v543
    %v576 = vunpack.c.l.b16 %v544
    %v577 = vunpack.c.l.b16 %v545
    %v578 = vunpack.c.l.b16 %v546
    %v579 = vunpack.c.l.b16 %v547
    %v580 = vunpack.c.l.b16 %v548
    %v581 = vunpack.c.l.b16 %v549
    %v582 = vunpack.c.l.b16 %v550
    %v583 = vunpack.c.l.b16 %v551
    %v584 = vunpack.c.l.b16 %v552
    %v585 = vpack.c.b16 %v570, %v569
    %v586 = vpack.c.b16 %v572, %v571
    %v587 = vpack.c.b16 %v574, %v573
    %v588 = vpack.c.b16 %v576, %v575
    %v589 = vpack.c.b16 %v578, %v577
    %v590 = vpack.c.b16 %v580, %v579
    %v591 = vpack.c.b16 %v582, %v581
    %v592 = vpack.c.b16 %v584, %v583
    %601 = vmatpush.bf16.msra.mxu0 %v592
    %602 = vmatpush.bf16.msra.mxu0 %v591
    %603 = vmatpush.bf16.msra.mxu0 %v590
    %604 = vmatpush.bf16.msra.mxu0 %v589
    %605 = vmatpush.bf16.msra.mxu0 %v588
    %606 = vmatpush.bf16.msra.mxu0 %v587
    %607 = vmatpush.bf16.msra.mxu0 %v586
    %608 = vmatpush.bf16.msra.mxu0 %v585
    %609 = vmatmul.bf16.gmra.mxu0 %v536
    %v610 = vpop.f32.mrf.mxu0
    %v611 = vadd.f32 0.0, %v610
    %v612 = vpop.f32.mrf.mxu0
    %v613 = vadd.f32 0.0, %v612
    %614 = vdwg.mxu0
    %v615 = vadd.f32 %v229, %v611
    %v616 = vadd.f32 %v231, %v613
    %617 = vadd.xlane.f32.xlu0 %v615
    %v618 = vpop.xlane.xlu0 %617
    %619 = vadd.xlane.f32.xlu0 %v616
    %v620 = vpop.xlane.xlu0 %619
    %v621 = vrcp.pop 128.0
    %v622 = vmul.f32 128.0, %v621
    %v623 = vsub.f32 1.0, %v622
    %v624 = vmul.f32 %v621, %v623
    %v625 = vadd.f32 %v621, %v624
    %vm626 = vweird.f32 %v621
    %v627 = vsel %vm626, %v621, %v625
    %v628 = vmul.f32 %v618, %v627
    %v629 = vmul.f32 %v620, %v627
    %v630 = vsub.f32 %v615, %v628
    %v631 = vsub.f32 %v616, %v629
    %v632 = vmul.f32 %v630, %v630
    %v633 = vmul.f32 %v631, %v631
    %634 = vadd.xlane.f32.xlu0 %v632
    %v635 = vpop.xlane.xlu0 %634
    %636 = vadd.xlane.f32.xlu0 %v633
    %v637 = vpop.xlane.xlu0 %636
    %v638 = vmul.f32 %v635, %v627
    %v639 = vmul.f32 %v637, %v627
    %v640 = vadd.f32 %v638, 1e-05
    %v641 = vadd.f32 %v639, 1e-05
    %v642 = vrsqrt.pop %v640
    %v643 = vmul.f32 %v642, %v640
    %v644 = vmul.f32 %v643, %v642
    %v645 = vmul.f32 0.5, %v644
    %v646 = vsub.f32 1.5, %v645
    %v647 = vmul.f32 %v642, %v646
    %vm648 = vweird.f32 %v640
    %vm649 = vweird.f32 %v642
    %vm650 = vmor %vm648, %vm649
    %v651 = vsel %vm650, %v642, %v647
    %v652 = vrsqrt.pop %v641
    %v653 = vmul.f32 %v652, %v641
    %v654 = vmul.f32 %v653, %v652
    %v655 = vmul.f32 0.5, %v654
    %v656 = vsub.f32 1.5, %v655
    %v657 = vmul.f32 %v652, %v656
    %vm658 = vweird.f32 %v641
    %vm659 = vweird.f32 %v652
    %vm660 = vmor %vm658, %vm659
    %v661 = vsel %vm660, %v652, %v657
    %v662 = vmul.f32 %v630, %v651
    %v663 = vmul.f32 %v631, %v661
    %v664 = vld [vmem:[%s7] sm:$0x1]
    %v666 = vperm.slane %v664, 0
    %v668 = vmul.f32 %v662, %v666
    %v669 = vmul.f32 %v663, %v666
    %v670 = vld [vmem:[%s8] sm:$0x1]
    %v672 = vperm.slane %v670, 0
    %v674 = vadd.f32 %v668, %v672
    %v675 = vadd.f32 %v669, %v672
    %v676 = vpack.c.bf16 %v675, %v674
    %v677 = vld [vmem:[#allocation9] sm:$0xff]
    %v678 = vld [vmem:[#allocation9 + $0x8] sm:$0xff]
    %v679 = vld [vmem:[#allocation9 + $0x10] sm:$0xff]
    %v680 = vld [vmem:[#allocation9 + $0x18] sm:$0xff]
    %v681 = vld [vmem:[#allocation9 + $0x20] sm:$0xff]
    %v682 = vld [vmem:[#allocation9 + $0x28] sm:$0xff]
    %v683 = vld [vmem:[#allocation9 + $0x30] sm:$0xff]
    %v684 = vld [vmem:[#allocation9 + $0x38] sm:$0xff]
    %v685 = vld [vmem:[#allocation9 + $0x40] sm:$0xff]
    %v686 = vld [vmem:[#allocation9 + $0x48] sm:$0xff]
    %v687 = vld [vmem:[#allocation9 + $0x50] sm:$0xff]
    %v688 = vld [vmem:[#allocation9 + $0x58] sm:$0xff]
    %v689 = vld [vmem:[#allocation9 + $0x60] sm:$0xff]
    %v690 = vld [vmem:[#allocation9 + $0x68] sm:$0xff]
    %v691 = vld [vmem:[#allocation9 + $0x70] sm:$0xff]
    %v692 = vld [vmem:[#allocation9 + $0x78] sm:$0xff]
    %v693 = vld [vmem:[%s10] sm:$0x3]
    %v695 = vperm.slane %v693, 0
    %v696 = vperm.slane %v693, 1
    %v715 = vunpack.c.l.b16 %v677
    %v716 = vunpack.c.h.b16 %v677
    %v717 = vunpack.c.l.b16 %v678
    %v718 = vunpack.c.h.b16 %v678
    %v719 = vunpack.c.l.b16 %v679
    %v720 = vunpack.c.h.b16 %v679
    %v721 = vunpack.c.l.b16 %v680
    %v722 = vunpack.c.h.b16 %v680
    %v723 = vunpack.c.l.b16 %v681
    %v724 = vunpack.c.h.b16 %v681
    %v725 = vunpack.c.l.b16 %v682
    %v726 = vunpack.c.h.b16 %v682
    %v727 = vunpack.c.l.b16 %v683
    %v728 = vunpack.c.h.b16 %v683
    %v729 = vunpack.c.l.b16 %v684
    %v730 = vunpack.c.h.b16 %v684
    %v731 = vunpack.c.l.b16 %v685
    %v732 = vunpack.c.h.b16 %v685
    %v733 = vunpack.c.l.b16 %v686
    %v734 = vunpack.c.h.b16 %v686
    %v735 = vunpack.c.l.b16 %v687
    %v736 = vunpack.c.h.b16 %v687
    %v737 = vunpack.c.l.b16 %v688
    %v738 = vunpack.c.h.b16 %v688
    %v739 = vunpack.c.l.b16 %v689
    %v740 = vunpack.c.h.b16 %v689
    %v741 = vunpack.c.l.b16 %v690
    %v742 = vunpack.c.h.b16 %v690
    %v743 = vunpack.c.l.b16 %v691
    %v744 = vunpack.c.h.b16 %v691
    %v745 = vunpack.c.l.b16 %v692
    %v746 = vunpack.c.h.b16 %v692
    %v747 = vpack.c.b16 %v717, %v715
    %v748 = vpack.c.b16 %v718, %v716
    %v749 = vpack.c.b16 %v721, %v719
    %v750 = vpack.c.b16 %v722, %v720
    %v751 = vpack.c.b16 %v725, %v723
    %v752 = vpack.c.b16 %v726, %v724
    %v753 = vpack.c.b16 %v729, %v727
    %v754 = vpack.c.b16 %v730, %v728
    %v755 = vpack.c.b16 %v733, %v731
    %v756 = vpack.c.b16 %v734, %v732
    %v757 = vpack.c.b16 %v737, %v735
    %v758 = vpack.c.b16 %v738, %v736
    %v759 = vpack.c.b16 %v741, %v739
    %v760 = vpack.c.b16 %v742, %v740
    %v761 = vpack.c.b16 %v745, %v743
    %v762 = vpack.c.b16 %v746, %v744
    %779 = vmatpush.bf16.msra.mxu0 %v761
    %780 = vmatpush.bf16.msra.mxu0 %v759
    %781 = vmatpush.bf16.msra.mxu0 %v757
    %782 = vmatpush.bf16.msra.mxu0 %v755
    %783 = vmatpush.bf16.msra.mxu0 %v753
    %784 = vmatpush.bf16.msra.mxu0 %v751
    %785 = vmatpush.bf16.msra.mxu0 %v749
    %786 = vmatpush.bf16.msra.mxu0 %v747
    %787 = vmatmul.bf16.gmra.mxu0 %v676
    %v788 = vpop.f32.mrf.mxu0
    %v789 = vadd.f32 %v695, %v788
    %v790 = vpop.f32.mrf.mxu0
    %v791 = vadd.f32 %v695, %v790
    %792 = vdwg.mxu0
    %793 = vmatpush.bf16.msra.mxu0 %v762
    %794 = vmatpush.bf16.msra.mxu0 %v760
    %795 = vmatpush.bf16.msra.mxu0 %v758
    %796 = vmatpush.bf16.msra.mxu0 %v756
    %797 = vmatpush.bf16.msra.mxu0 %v754
    %798 = vmatpush.bf16.msra.mxu0 %v752
    %799 = vmatpush.bf16.msra.mxu0 %v750
    %800 = vmatpush.bf16.msra.mxu0 %v748
    %801 = vmatmul.bf16.gmra.mxu0 %v676
    %v802 = vpop.f32.mrf.mxu0
    %v803 = vadd.f32 %v696, %v802
    %v804 = vpop.f32.mrf.mxu0
    %v805 = vadd.f32 %v696, %v804
    %806 = vdwg.mxu0
    %v807 = vmul.f32 %v789, %v789
    %v808 = vmul.f32 %v803, %v803
    %v809 = vmul.f32 %v791, %v791
    %v810 = vmul.f32 %v805, %v805
    %v811 = vmul.f32 %v789, %v807
    %v812 = vmul.f32 %v803, %v808
    %v813 = vmul.f32 %v791, %v809
    %v814 = vmul.f32 %v805, %v810
    %v815 = vmul.f32 %v811, 0.044715
    %v816 = vmul.f32 %v812, 0.044715
    %v817 = vmul.f32 %v813, 0.044715
    %v818 = vmul.f32 %v814, 0.044715
    %v819 = vadd.f32 %v789, %v815
    %v820 = vadd.f32 %v803, %v816
    %v821 = vadd.f32 %v791, %v817
    %v822 = vadd.f32 %v805, %v818
    %v823 = vmul.f32 %v819, 0.7978846
    %v824 = vmul.f32 %v820, 0.7978846
    %v825 = vmul.f32 %v821, 0.7978846
    %v826 = vmul.f32 %v822, 0.7978846
    %v827 = vtanh.pop %v823
    %v828 = vtanh.pop %v824
    %v829 = vtanh.pop %v825
    %v830 = vtanh.pop %v826
    %v831 = vadd.f32 %v827, 1.0
    %v832 = vadd.f32 %v828, 1.0
    %v833 = vadd.f32 %v829, 1.0
    %v834 = vadd.f32 %v830, 1.0
    %v835 = vmul.f32 %v831, 0.5
    %v836 = vmul.f32 %v832, 0.5
    %v837 = vmul.f32 %v833, 0.5
    %v838 = vmul.f32 %v834, 0.5
    %v839 = vmul.f32 %v789, %v835
    %v840 = vmul.f32 %v803, %v836
    %v841 = vmul.f32 %v791, %v837
    %v842 = vmul.f32 %v805, %v838
    %v843 = vpack.c.bf16 %v841, %v839
    %v844 = vpack.c.bf16 %v842, %v840
    %v845 = vld [vmem:[#allocation10] sm:$0xf]
    %v846 = vld [vmem:[#allocation10 + $0x4] sm:$0xf]
    %v847 = vld [vmem:[#allocation10 + $0x8] sm:$0xf]
    %v848 = vld [vmem:[#allocation10 + $0xc] sm:$0xf]
    %v849 = vld [vmem:[#allocation10 + $0x10] sm:$0xf]
    %v850 = vld [vmem:[#allocation10 + $0x14] sm:$0xf]
    %v851 = vld [vmem:[#allocation10 + $0x18] sm:$0xf]
    %v852 = vld [vmem:[#allocation10 + $0x1c] sm:$0xf]
    %v853 = vld [vmem:[#allocation10 + $0x20] sm:$0xf]
    %v854 = vld [vmem:[#allocation10 + $0x24] sm:$0xf]
    %v855 = vld [vmem:[#allocation10 + $0x28] sm:$0xf]
    %v856 = vld [vmem:[#allocation10 + $0x2c] sm:$0xf]
    %v857 = vld [vmem:[#allocation10 + $0x30] sm:$0xf]
    %v858 = vld [vmem:[#allocation10 + $0x34] sm:$0xf]
    %v859 = vld [vmem:[#allocation10 + $0x38] sm:$0xf]
    %v860 = vld [vmem:[#allocation10 + $0x3c] sm:$0xf]
    %v861 = vld [vmem:[#allocation10 + $0x40] sm:$0xf]
    %v862 = vld [vmem:[#allocation10 + $0x44] sm:$0xf]
    %v863 = vld [vmem:[#allocation10 + $0x48] sm:$0xf]
    %v864 = vld [vmem:[#allocation10 + $0x4c] sm:$0xf]
    %v865 = vld [vmem:[#allocation10 + $0x50] sm:$0xf]
    %v866 = vld [vmem:[#allocation10 + $0x54] sm:$0xf]
    %v867 = vld [vmem:[#allocation10 + $0x58] sm:$0xf]
    %v868 = vld [vmem:[#allocation10 + $0x5c] sm:$0xf]
    %v869 = vld [vmem:[#allocation10 + $0x60] sm:$0xf]
    %v870 = vld [vmem:[#allocation10 + $0x64] sm:$0xf]
    %v871 = vld [vmem:[#allocation10 + $0x68] sm:$0xf]
    %v872 = vld [vmem:[#allocation10 + $0x6c] sm:$0xf]
    %v873 = vld [vmem:[#allocation10 + $0x70] sm:$0xf]
    %v874 = vld [vmem:[#allocation10 + $0x74] sm:$0xf]
    %v875 = vld [vmem:[#allocation10 + $0x78] sm:$0xf]
    %v876 = vld [vmem:[#allocation10 + $0x7c] sm:$0xf]
    %v877 = vld [vmem:[%s12] sm:$0x1]
    %v879 = vperm.slane %v877, 0
    %v913 = vunpack.c.l.b16 %v845
    %v914 = vunpack.c.l.b16 %v846
    %v915 = vunpack.c.l.b16 %v847
    %v916 = vunpack.c.l.b16 %v848
    %v917 = vunpack.c.l.b16 %v849
    %v918 = vunpack.c.l.b16 %v850
    %v919 = vunpack.c.l.b16 %v851
    %v920 = vunpack.c.l.b16 %v852
    %v921 = vunpack.c.l.b16 %v853
    %v922 = vunpack.c.l.b16 %v854
    %v923 = vunpack.c.l.b16 %v855
    %v924 = vunpack.c.l.b16 %v856
    %v925 = vunpack.c.l.b16 %v857
    %v926 = vunpack.c.l.b16 %v858
    %v927 = vunpack.c.l.b16 %v859
    %v928 = vunpack.c.l.b16 %v860
    %v929 = vunpack.c.l.b16 %v861
    %v930 = vunpack.c.l.b16 %v862
    %v931 = vunpack.c.l.b16 %v863
    %v932 = vunpack.c.l.b16 %v864
    %v933 = vunpack.c.l.b16 %v865
    %v934 = vunpack.c.l.b16 %v866
    %v935 = vunpack.c.l.b16 %v867
    %v936 = vunpack.c.l.b16 %v868
    %v937 = vunpack.c.l.b16 %v869
    %v938 = vunpack.c.l.b16 %v870
    %v939 = vunpack.c.l.b16 %v871
    %v940 = vunpack.c.l.b16 %v872
    %v941 = vunpack.c.l.b16 %v873
    %v942 = vunpack.c.l.b16 %v874
    %v943 = vunpack.c.l.b16 %v875
    %v944 = vunpack.c.l.b16 %v876
    %v945 = vpack.c.b16 %v914, %v913
    %v946 = vpack.c.b16 %v916, %v915
    %v947 = vpack.c.b16 %v918, %v917
    %v948 = vpack.c.b16 %v920, %v919
    %v949 = vpack.c.b16 %v922, %v921
    %v950 = vpack.c.b16 %v924, %v923
    %v951 = vpack.c.b16 %v926, %v925
    %v952 = vpack.c.b16 %v928, %v927
    %v953 = vpack.c.b16 %v930, %v929
    %v954 = vpack.c.b16 %v932, %v931
    %v955 = vpack.c.b16 %v934, %v933
    %v956 = vpack.c.b16 %v936, %v935
    %v957 = vpack.c.b16 %v938, %v937
    %v958 = vpack.c.b16 %v940, %v939
    %v959 = vpack.c.b16 %v942, %v941
    %v960 = vpack.c.b16 %v944, %v943
    %977 = vmatpush.bf16.msra.mxu0 %v952
    %978 = vmatpush.bf16.msra.mxu0 %v951
    %979 = vmatpush.bf16.msra.mxu0 %v950
    %980 = vmatpush.bf16.msra.mxu0 %v949
    %981 = vmatpush.bf16.msra.mxu0 %v948
    %982 = vmatpush.bf16.msra.mxu0 %v947
    %983 = vmatpush.bf16.msra.mxu0 %v946
    %984 = vmatpush.bf16.msra.mxu0 %v945
    %985 = vmatmul.bf16.gmra.mxu0 %v843
    %v986 = vpop.f32.mrf.mxu0
    %v987 = vadd.f32 %v879, %v986
    %v988 = vpop.f32.mrf.mxu0
    %v989 = vadd.f32 %v879, %v988
    %990 = vdwg.mxu0
    %991 = vmatpush.bf16.msra.mxu0 %v960
    %992 = vmatpush.bf16.msra.mxu0 %v959
    %993 = vmatpush.bf16.msra.mxu0 %v958
    %994 = vmatpush.bf16.msra.mxu0 %v957
    %995 = vmatpush.bf16.msra.mxu0 %v956
    %996 = vmatpush.bf16.msra.mxu0 %v955
    %997 = vmatpush.bf16.msra.mxu0 %v954
    %998 = vmatpush.bf16.msra.mxu0 %v953
    %999 = vmatmul.bf16.gmra.mxu0 %v844
    %v1000 = vpop.f32.mrf.mxu0
    %v1001 = vadd.f32 %v987, %v1000
    %v1002 = vpop.f32.mrf.mxu0
    %v1003 = vadd.f32 %v989, %v1002
    %1004 = vdwg.mxu0
    %v1005 = vadd.f32 %v674, %v1001
    %v1006 = vadd.f32 %v675, %v1003
    %1007 = vadd.xlane.f32.xlu0 %v1005
    %v1008 = vpop.xlane.xlu0 %1007
    %1009 = vadd.xlane.f32.xlu0 %v1006
    %v1010 = vpop.xlane.xlu0 %1009
    %v1011 = vmul.f32 %v1008, %v627
    %v1012 = vmul.f32 %v1010, %v627
    %v1013 = vsub.f32 %v1005, %v1011
    %v1014 = vsub.f32 %v1006, %v1012
    %v1015 = vmul.f32 %v1013, %v1013
    %v1016 = vmul.f32 %v1014, %v1014
    %1017 = vadd.xlane.f32.xlu0 %v1015
    %v1018 = vpop.xlane.xlu0 %1017
    %1019 = vadd.xlane.f32.xlu0 %v1016
    %v1020 = vpop.xlane.xlu0 %1019
    %v1021 = vmul.f32 %v1018, %v627
    %v1022 = vmul.f32 %v1020, %v627
    %v1023 = vadd.f32 %v1021, 1e-05
    %v1024 = vadd.f32 %v1022, 1e-05
    %v1025 = vrsqrt.pop %v1023
    %v1026 = vmul.f32 %v1025, %v1023
    %v1027 = vmul.f32 %v1026, %v1025
    %v1028 = vmul.f32 0.5, %v1027
    %v1029 = vsub.f32 1.5, %v1028
    %v1030 = vmul.f32 %v1025, %v1029
    %vm1031 = vweird.f32 %v1023
    %vm1032 = vweird.f32 %v1025
    %vm1033 = vmor %vm1031, %vm1032
    %v1034 = vsel %vm1033, %v1025, %v1030
    %v1035 = vrsqrt.pop %v1024
    %v1036 = vmul.f32 %v1035, %v1024
    %v1037 = vmul.f32 %v1036, %v1035
    %v1038 = vmul.f32 0.5, %v1037
    %v1039 = vsub.f32 1.5, %v1038
    %v1040 = vmul.f32 %v1035, %v1039
    %vm1041 = vweird.f32 %v1024
    %vm1042 = vweird.f32 %v1035
    %vm1043 = vmor %vm1041, %vm1042
    %v1044 = vsel %vm1043, %v1035, %v1040
    %v1045 = vmul.f32 %v1013, %v1034
    %v1046 = vmul.f32 %v1014, %v1044
    %v1047 = vld [vmem:[%s13] sm:$0x1]
    %v1049 = vperm.slane %v1047, 0
    %v1051 = vmul.f32 %v1045, %v1049
    %v1052 = vmul.f32 %v1046, %v1049
    %v1053 = vld [vmem:[%s14] sm:$0x1]
    %v1055 = vperm.slane %v1053, 0
    %v1057 = vadd.f32 %v1051, %v1055
    %v1058 = vadd.f32 %v1052, %v1055
    %v1059 = vpack.c.bf16 %v1058, %v1057
    %v1060 = vld [vmem:[#allocation12] sm:$0xf]
    %v1061 = vld [vmem:[#allocation12 + $0x4] sm:$0xf]
    %v1062 = vld [vmem:[#allocation12 + $0x8] sm:$0xf]
    %v1063 = vld [vmem:[#allocation12 + $0xc] sm:$0xf]
    %v1064 = vld [vmem:[#allocation12 + $0x10] sm:$0xf]
    %v1065 = vld [vmem:[#allocation12 + $0x14] sm:$0xf]
    %v1066 = vld [vmem:[#allocation12 + $0x18] sm:$0xf]
    %v1067 = vld [vmem:[#allocation12 + $0x1c] sm:$0xf]
    %v1068 = vld [vmem:[#allocation12 + $0x20] sm:$0xf]
    %v1069 = vld [vmem:[#allocation12 + $0x24] sm:$0xf]
    %v1070 = vld [vmem:[#allocation12 + $0x28] sm:$0xf]
    %v1071 = vld [vmem:[#allocation12 + $0x2c] sm:$0xf]
    %v1072 = vld [vmem:[#allocation12 + $0x30] sm:$0xf]
    %v1073 = vld [vmem:[#allocation12 + $0x34] sm:$0xf]
    %v1074 = vld [vmem:[#allocation12 + $0x38] sm:$0xf]
    %v1075 = vld [vmem:[#allocation12 + $0x3c] sm:$0xf]
    %v1076 = vld [vmem:[%s16] sm:$0x1]
    %v1078 = vperm.slane %v1076, 0
    %v1096 = vunpack.c.l.b16 %v1060
    %v1097 = vunpack.c.l.b16 %v1061
    %v1098 = vunpack.c.l.b16 %v1062
    %v1099 = vunpack.c.l.b16 %v1063
    %v1100 = vunpack.c.l.b16 %v1064
    %v1101 = vunpack.c.l.b16 %v1065
    %v1102 = vunpack.c.l.b16 %v1066
    %v1103 = vunpack.c.l.b16 %v1067
    %v1104 = vunpack.c.l.b16 %v1068
    %v1105 = vunpack.c.l.b16 %v1069
    %v1106 = vunpack.c.l.b16 %v1070
    %v1107 = vunpack.c.l.b16 %v1071
    %v1108 = vunpack.c.l.b16 %v1072
    %v1109 = vunpack.c.l.b16 %v1073
    %v1110 = vunpack.c.l.b16 %v1074
    %v1111 = vunpack.c.l.b16 %v1075
    %v1112 = vpack.c.b16 %v1097, %v1096
    %v1113 = vpack.c.b16 %v1099, %v1098
    %v1114 = vpack.c.b16 %v1101, %v1100
    %v1115 = vpack.c.b16 %v1103, %v1102
    %v1116 = vpack.c.b16 %v1105, %v1104
    %v1117 = vpack.c.b16 %v1107, %v1106
    %v1118 = vpack.c.b16 %v1109, %v1108
    %v1119 = vpack.c.b16 %v1111, %v1110
    %1128 = vmatpush.bf16.msra.mxu0 %v1119
    %1129 = vmatpush.bf16.msra.mxu0 %v1118
    %1130 = vmatpush.bf16.msra.mxu0 %v1117
    %1131 = vmatpush.bf16.msra.mxu0 %v1116
    %1132 = vmatpush.bf16.msra.mxu0 %v1115
    %1133 = vmatpush.bf16.msra.mxu0 %v1114
    %1134 = vmatpush.bf16.msra.mxu0 %v1113
    %1135 = vmatpush.bf16.msra.mxu0 %v1112
    %1136 = vmatmul.bf16.gmra.mxu0 %v1059
    %v1137 = vpop.f32.mrf.mxu0
    %v1138 = vadd.f32 %v1078, %v1137
    %v1139 = vpop.f32.mrf.mxu0
    %v1140 = vadd.f32 %v1078, %v1139
    %1141 = vdwg.mxu0
    %1142 = vst [vmem:[%s17] sm:$0xff] %v1138
    %1143 = vst [vmem:[%s17 + $0x8] sm:$0xff] %v1140
    // Predicated region
    $region98: #{forward.1} parent=1 // pred_check
      _
    $region99: #{forward.1} parent=1 // pred_check_branch
      %1145 = sbr.rel (0) target = $region101
    $region100: #{forward.1} parent=1 // pred_region
      _
    $region101: #{forward.1} parent=1 // pred_fallthru
      _
    // Predicated region
    $region102: #{forward.1} parent=1 // pred_check
      _
    $region103: #{forward.1} parent=1 // pred_check_branch
      %1147 = sbr.rel (0) target = $region105
    $region104: #{forward.1} parent=1 // pred_region
      _
    $region105: #{forward.1} parent=1 // pred_fallthru
      _
    %1148 = vsyncpa [#allocation3], 1
    %1149 = vsyncpa [#allocation5], 1
    %1150 = vsyncpa [#allocation8], 1
    %1151 = vsyncpa [#allocation11], 1

</llo_original>
